<compile_context>
chip_gen: v5e
topology: v5e:2x2
jax: 0.10.0
libtpu: 0.0.40
codegen_flags: <defaults>
</compile_context>

<pallas_src>
import functools

import jax
import jax.numpy as jnp
from jax.experimental import pallas as pl
from jax.experimental.pallas import tpu as pltpu

_SQRT_HALF = 0.7071067811865476


def _erf_poly(z):
    """Abramowitz & Stegun 7.1.26 rational erf approximation, |err| <= 1.5e-7.

    Only exp/mul/add/select/reciprocal -- all have Mosaic lowerings.
    """
    # TODO(synk): switch to jax.lax.erf if/when Mosaic ships a native erf lowering.
    a = jnp.abs(z)
    t = pl.reciprocal(1.0 + 0.3275911 * a, approx=False)   # divide -> EUP slot
    poly = t * (0.254829592
                + t * (-0.284496736
                       + t * (1.421413741
                              + t * (-1.453152027 + t * 1.061405429))))
    e = 1.0 - poly * jnp.exp(-a * a)
    return jnp.where(z < 0.0, -e, e)


def _gelu_exact(x):
    """Exact (erf-based) GELU, matching torch.nn.GELU() default."""
    return 0.5 * x * (1.0 + _erf_poly(x * _SQRT_HALF))


def _demo_block_kernel(x_ref, w1s_ref, b1_ref, w2t_ref, o_ref, *, eps):
    # x_ref: (rows, D); w1s_ref/w2t_ref: (D, D) pre-transposed (gamma folded
    # into w1s); b1_ref: (1, D) f32 == beta @ W1.T.
    xf = x_ref[...].astype(jnp.float32)

    # --- LayerNorm statistics over the last dim (biased variance) ---
    mu = jnp.mean(xf, axis=-1, keepdims=True)
    xc = xf - mu
    var = jnp.mean(xc * xc, axis=-1, keepdims=True)
    h = xc * jax.lax.rsqrt(var + eps)          # rsqrt on the EUP, no vector divide
    # (gamma/beta folded into w1s/b1 at prep time -- no per-element affine here.)

    # --- f1: h @ (gamma * W1.T) + beta @ W1.T, single-pass MXU, f32 accumulate ---
    h = jnp.dot(h, w1s_ref[...], preferred_element_type=jnp.float32) + b1_ref[...]

    # --- exact GELU ---
    h = _gelu_exact(h)

    # --- f2: h @ W2.T ---
    h = jnp.dot(h, w2t_ref[...], preferred_element_type=jnp.float32)

    # --- residual add: re-read x (short live range) ---
    o_ref[...] = (x_ref[...].astype(jnp.float32) + h).astype(o_ref.dtype)


def prepare_demo_block_params(gamma, beta, w1, w2):
    """One-time parameter prep (hoisted out of the per-forward path).

    torch Linear computes x @ W.T, so pre-transpose the weights, fold the
    LayerNorm affine into the first matmul:
        (h * gamma + beta) @ W1.T == h @ (gamma[:, None] * W1.T) + beta @ W1.T
    """
    D = w1.shape[0]
    w1t = jnp.transpose(w1)
    w2t = jnp.transpose(w2)
    w1s = (gamma.astype(jnp.float32)[:, None] * w1t.astype(jnp.float32)).astype(w1.dtype)
    b1 = jnp.matmul(beta.astype(jnp.float32), w1t.astype(jnp.float32),
                    precision=jax.lax.Precision.HIGHEST).reshape(1, D)
    return w1s, b1, w2t


def _round_up(n, m):
    return ((n + m - 1) // m) * m


def demo_block_forward(x, params, eps=1e-5, block_rows=2048):
    """Fused DemoBlock forward.  x: (..., D); params from prepare_demo_block_params."""
    w1s, b1, w2t = params
    orig_shape = x.shape
    D = orig_shape[-1]
    x2d = x.reshape(-1, D)
    N = x2d.shape[0]

    # Row-tile size: full N (rounded to 8 sublanes) for small inputs, else
    # block_rows.  Pad N so every block is full -- no whole-tensor fallback,
    # no partial/masked tail block, bounded VMEM on every chip generation.
    rb = block_rows if N > block_rows else max(8, _round_up(N, 8))
    n_pad = _round_up(N, rb)
    if n_pad != N:
        x2d = jnp.pad(x2d, ((0, n_pad - N), (0, 0)))

    kernel = functools.partial(_demo_block_kernel, eps=eps)
    out2d = pl.pallas_call(
        kernel,
        out_shape=jax.ShapeDtypeStruct((n_pad, D), x.dtype),
        grid=(n_pad // rb,),
        in_specs=[
            pl.BlockSpec((rb, D), lambda i: (i, 0)),
            pl.BlockSpec((D, D), lambda i: (0, 0)),
            pl.BlockSpec((1, D), lambda i: (0, 0)),
            pl.BlockSpec((D, D), lambda i: (0, 0)),
        ],
        out_specs=pl.BlockSpec((rb, D), lambda i: (i, 0)),
        compiler_params=pltpu.CompilerParams(
            dimension_semantics=("parallel",),
            vmem_limit_bytes=32 * 1024 * 1024,   # above v5e's 16 MiB scoped default
        ),
    )(x2d, w1s, b1, w2t)

    if n_pad != N:
        out2d = out2d[:N]
    return out2d.reshape(orig_shape)


def _reference(x, gamma, beta, w1, w2, eps=1e-5):
    """Pure-JAX f32-accurate reference mirroring DemoBlock.forward."""
    mu = jnp.mean(x, axis=-1, keepdims=True)
    var = jnp.mean((x - mu) ** 2, axis=-1, keepdims=True)
    h = (x - mu) / jnp.sqrt(var + eps) * gamma + beta
    h = jnp.matmul(h, w1.T, precision=jax.lax.Precision.HIGHEST)
    h = jax.nn.gelu(h, approximate=False)        # exact erf GELU (nn.GELU default)
    h = jnp.matmul(h, w2.T, precision=jax.lax.Precision.HIGHEST)
    return x + h


if __name__ == "__main__":
    key = jax.random.PRNGKey(0)
    kx, k1, k1r, k2 = jax.random.split(key, 4)

    # Small shapes implied by the forward: (batch, seq, feat_dims).
    # feat_dims = 128 so the last dim is lane-dense on TPU.
    B, S, D = 2, 8, 128
    x = jax.random.normal(kx, (B, S, D), dtype=jnp.float32)

    # Parameters mirroring DemoBlock.__init__:
    gamma = jnp.ones((D,), jnp.float32)          # nn.LayerNorm weight
    beta = jnp.zeros((D,), jnp.float32)          # nn.LayerNorm bias
    bound = 1.0 / (D ** 0.5)                     # nn.Linear default init bound
    w1 = jax.random.uniform(k1, (D, D), jnp.float32, minval=-bound, maxval=bound)
    w1 = w1.at[2].set(jax.random.normal(k1r, (D,), jnp.float32))   # f1.weight[2] = randn
    w1 = w1.at[1, 5].set(jnp.max(w1) * 2.0)                        # f1.weight[1][5] = max*2
    w2 = jax.random.uniform(k2, (D, D), jnp.float32, minval=-bound, maxval=bound)

    params = prepare_demo_block_params(gamma, beta, w1, w2)   # one-time prep
    out = demo_block_forward(x, params)
    out = jax.block_until_ready(out)

    ref = _reference(x, gamma, beta, w1, w2)
    assert out.shape == x.shape and out.dtype == x.dtype
    # Tolerance reflects the single-pass bf16 MXU path (f32 accumulate) in the
    # kernel vs the f32 HIGHEST-precision reference.
    assert jnp.allclose(out, ref, atol=5e-2, rtol=5e-2), (
        f"mismatch vs reference: max abs err = {jnp.max(jnp.abs(out - ref))}")

    print("KERNEL_OK")
</pallas_src>

<mosaic_0001>
module attributes {stable_mosaic.version = 11 : i64} {
  func.func @_demo_block_kernel(%arg0: i32, %arg1: memref<16x128xf32, #tpu.memory_space<vmem>>, %arg2: memref<128x128xf32, #tpu.memory_space<vmem>>, %arg3: memref<1x128xf32, #tpu.memory_space<vmem>>, %arg4: memref<128x128xf32, #tpu.memory_space<vmem>>, %arg5: memref<16x128xf32, #tpu.memory_space<vmem>>) attributes {dimension_semantics = [#tpu.dimension_semantics<parallel>], iteration_bounds = array<i64: 1>, scalar_prefetch = 0 : i64, scratch_operands = 0 : i64, tpu.core_type = #tpu.core_type<tc>, window_params = [{transform_indices = @transform_0, window_bounds = array<i64: 16, 128>}, {pipeline_mode = #tpu.pipeline_mode<synchronous>, transform_indices = @transform_1, window_bounds = array<i64: 128, 128>}, {pipeline_mode = #tpu.pipeline_mode<synchronous>, transform_indices = @transform_2, window_bounds = array<i64: 1, 128>}, {pipeline_mode = #tpu.pipeline_mode<synchronous>, transform_indices = @transform_3, window_bounds = array<i64: 128, 128>}, {transform_indices = @transform_4, window_bounds = array<i64: 16, 128>}]} {
    %c0 = arith.constant 0 : index
    %c0_0 = arith.constant 0 : index
    %0 = vector.load %arg1[%c0, %c0_0] : memref<16x128xf32, #tpu.memory_space<vmem>>, vector<16x128xf32>
    %cst = arith.constant dense<0.000000e+00> : vector<16xf32>
    %1 = vector.multi_reduction <add>, %0, %cst [1] : vector<16x128xf32> to vector<16xf32>
    %2 = vector.shape_cast %1 : vector<16xf32> to vector<16x1xf32>
    %cst_1 = arith.constant 1.280000e+02 : f32
    %3 = vector.broadcast %cst_1 : f32 to vector<16x1xf32>
    %4 = arith.divf %2, %3 : vector<16x1xf32>
    %5 = vector.broadcast %4 : vector<16x1xf32> to vector<16x128xf32>
    %6 = arith.subf %0, %5 : vector<16x128xf32>
    %7 = arith.mulf %6, %6 : vector<16x128xf32>
    %cst_2 = arith.constant dense<0.000000e+00> : vector<16xf32>
    %8 = vector.multi_reduction <add>, %7, %cst_2 [1] : vector<16x128xf32> to vector<16xf32>
    %9 = vector.shape_cast %8 : vector<16xf32> to vector<16x1xf32>
    %cst_3 = arith.constant 1.280000e+02 : f32
    %10 = vector.broadcast %cst_3 : f32 to vector<16x1xf32>
    %11 = arith.divf %9, %10 : vector<16x1xf32>
    %cst_4 = arith.constant 9.99999974E-6 : f32
    %12 = vector.broadcast %cst_4 : f32 to vector<16x1xf32>
    %13 = arith.addf %11, %12 : vector<16x1xf32>
    %14 = math.rsqrt %13 : vector<16x1xf32>
    %15 = vector.broadcast %14 : vector<16x1xf32> to vector<16x128xf32>
    %16 = arith.mulf %6, %15 : vector<16x128xf32>
    %c0_5 = arith.constant 0 : index
    %c0_6 = arith.constant 0 : index
    %17 = vector.load %arg2[%c0_5, %c0_6] : memref<128x128xf32, #tpu.memory_space<vmem>>, vector<128x128xf32>
    %cst_7 = arith.constant dense<0.000000e+00> : vector<16x128xf32>
    %18 = tpu.matmul %16, %17, %cst_7 {dimension_numbers = #tpu.dot_dimension_numbers<[1], [0], [0], [1], [0, 0, 1, 1], [], []>} : vector<16x128xf32>, vector<128x128xf32>, vector<16x128xf32> -> vector<16x128xf32>
    %c0_8 = arith.constant 0 : index
    %c0_9 = arith.constant 0 : index
    %19 = vector.load %arg3[%c0_8, %c0_9] : memref<1x128xf32, #tpu.memory_space<vmem>>, vector<1x128xf32>
    %20 = vector.broadcast %19 : vector<1x128xf32> to vector<16x128xf32>
    %21 = arith.addf %18, %20 : vector<16x128xf32>
    %cst_10 = arith.constant 5.000000e-01 : f32
    %22 = vector.broadcast %cst_10 : f32 to vector<16x128xf32>
    %23 = arith.mulf %22, %21 : vector<16x128xf32>
    %cst_11 = arith.constant 0.707106769 : f32
    %24 = vector.broadcast %cst_11 : f32 to vector<16x128xf32>
    %25 = arith.mulf %21, %24 : vector<16x128xf32>
    %26 = math.absf %25 : vector<16x128xf32>
    %cst_12 = arith.constant 0.327591091 : f32
    %27 = vector.broadcast %cst_12 : f32 to vector<16x128xf32>
    %28 = arith.mulf %27, %26 : vector<16x128xf32>
    %cst_13 = arith.constant 1.000000e+00 : f32
    %29 = vector.broadcast %cst_13 : f32 to vector<16x128xf32>
    %30 = arith.addf %29, %28 : vector<16x128xf32>
    %31 = tpu.reciprocal %30 : vector<16x128xf32> -> vector<16x128xf32>
    %cst_14 = arith.constant 1.06140542 : f32
    %32 = vector.broadcast %cst_14 : f32 to vector<16x128xf32>
    %33 = arith.mulf %31, %32 : vector<16x128xf32>
    %cst_15 = arith.constant -1.45315206 : f32
    %34 = vector.broadcast %cst_15 : f32 to vector<16x128xf32>
    %35 = arith.addf %34, %33 : vector<16x128xf32>
    %36 = arith.mulf %31, %35 : vector<16x128xf32>
    %cst_16 = arith.constant 1.42141378 : f32
    %37 = vector.broadcast %cst_16 : f32 to vector<16x128xf32>
    %38 = arith.addf %37, %36 : vector<16x128xf32>
    %39 = arith.mulf %31, %38 : vector<16x128xf32>
    %cst_17 = arith.constant -0.284496725 : f32
    %40 = vector.broadcast %cst_17 : f32 to vector<16x128xf32>
    %41 = arith.addf %40, %39 : vector<16x128xf32>
    %42 = arith.mulf %31, %41 : vector<16x128xf32>
    %cst_18 = arith.constant 0.254829586 : f32
    %43 = vector.broadcast %cst_18 : f32 to vector<16x128xf32>
    %44 = arith.addf %43, %42 : vector<16x128xf32>
    %45 = arith.mulf %31, %44 : vector<16x128xf32>
    %cst_19 = arith.constant 0.000000e+00 : f32
    %46 = vector.broadcast %cst_19 : f32 to vector<16x128xf32>
    %47 = arith.subf %46, %26 : vector<16x128xf32>
    %48 = arith.mulf %47, %26 : vector<16x128xf32>
    %49 = math.exp %48 : vector<16x128xf32>
    %50 = arith.mulf %45, %49 : vector<16x128xf32>
    %cst_20 = arith.constant 1.000000e+00 : f32
    %51 = vector.broadcast %cst_20 : f32 to vector<16x128xf32>
    %52 = arith.subf %51, %50 : vector<16x128xf32>
    %cst_21 = arith.constant 0.000000e+00 : f32
    %53 = vector.broadcast %cst_21 : f32 to vector<16x128xf32>
    %54 = arith.cmpf olt, %25, %53 : vector<16x128xf32>
    %cst_22 = arith.constant 0.000000e+00 : f32
    %55 = vector.broadcast %cst_22 : f32 to vector<16x128xf32>
    %56 = arith.subf %55, %52 : vector<16x128xf32>
    %57 = arith.select %54, %56, %52 : vector<16x128xi1>, vector<16x128xf32>
    %cst_23 = arith.constant 1.000000e+00 : f32
    %58 = vector.broadcast %cst_23 : f32 to vector<16x128xf32>
    %59 = arith.addf %58, %57 : vector<16x128xf32>
    %60 = arith.mulf %23, %59 : vector<16x128xf32>
    %c0_24 = arith.constant 0 : index
    %c0_25 = arith.constant 0 : index
    %61 = vector.load %arg4[%c0_24, %c0_25] : memref<128x128xf32, #tpu.memory_space<vmem>>, vector<128x128xf32>
    %cst_26 = arith.constant dense<0.000000e+00> : vector<16x128xf32>
    %62 = tpu.matmul %60, %61, %cst_26 {dimension_numbers = #tpu.dot_dimension_numbers<[1], [0], [0], [1], [0, 0, 1, 1], [], []>} : vector<16x128xf32>, vector<128x128xf32>, vector<16x128xf32> -> vector<16x128xf32>
    %c0_27 = arith.constant 0 : index
    %c0_28 = arith.constant 0 : index
    %63 = vector.load %arg1[%c0_27, %c0_28] : memref<16x128xf32, #tpu.memory_space<vmem>>, vector<16x128xf32>
    %64 = arith.addf %63, %62 : vector<16x128xf32>
    %c0_29 = arith.constant 0 : index
    %c0_30 = arith.constant 0 : index
    %65 = vector.load %arg5[%c0_29, %c0_30] : memref<16x128xf32, #tpu.memory_space<vmem>>, vector<16x128xf32>
    tpu.vector_store %arg5[%c0_29, %c0_30], %64 {strides = array<i32>} : memref<16x128xf32, #tpu.memory_space<vmem>>, vector<16x128xf32>,
    return
  }
  func.func @transform_0(%arg0: i32) -> (i32, i32) {
    %c0_i32 = arith.constant 0 : i32
    %c0_i32_0 = arith.constant 0 : i32
    return %arg0, %c0_i32 : i32, i32
  }
  func.func @transform_1(%arg0: i32) -> (i32, i32) {
    %c0_i32 = arith.constant 0 : i32
    %c0_i32_0 = arith.constant 0 : i32
    %c0_i32_1 = arith.constant 0 : i32
    return %c0_i32, %c0_i32_0 : i32, i32
  }
  func.func @transform_2(%arg0: i32) -> (i32, i32) {
    %c0_i32 = arith.constant 0 : i32
    %c0_i32_0 = arith.constant 0 : i32
    %c0_i32_1 = arith.constant 0 : i32
    return %c0_i32, %c0_i32_0 : i32, i32
  }
  func.func @transform_3(%arg0: i32) -> (i32, i32) {
    %c0_i32 = arith.constant 0 : i32
    %c0_i32_0 = arith.constant 0 : i32
    %c0_i32_1 = arith.constant 0 : i32
    return %c0_i32, %c0_i32_0 : i32, i32
  }
  func.func @transform_4(%arg0: i32) -> (i32, i32) {
    %c0_i32 = arith.constant 0 : i32
    %c0_i32_0 = arith.constant 0 : i32
    return %arg0, %c0_i32 : i32, i32
  }
}

</mosaic_0001>

<llo_original>
// kernel: tpu_custom_call.1
$region0: #{tpu_custom_call.1}
  #allocation0 [shape = 'u32[]', space=smem, size = 0x4, offset = 0x4, fixed_abs, tag = 'smem constant byte address 0x4 - core index']
  #allocation1 [shape = 'u32[72,128]{1,0:T(1,128)}', space=vmem, size = 0x9000, scoped, tag = 'internal scratch']
  %s0 = inlined_call_operand.hbm [shape: f32[16,128], index: 0, kind: input, shape index: {}]
  %s1 = inlined_call_operand.hbm [shape: f32[128,128], index: 1, kind: input, shape index: {}]
  %s2 = inlined_call_operand.vmem [shape: f32[1,128], index: 2, kind: input, shape index: {}]
  %s3 = inlined_call_operand.hbm [shape: f32[128,128], index: 3, kind: input, shape index: {}]
  %s4 = inlined_call_operand.hbm [shape: f32[16,128], index: 4, kind: output, shape index: {}]
  %s5 = sld [smem:[#allocation0]]
  $region38: #{tpu_custom_call.1} parent=0
    _
  %s7 = ssub.s32 1, %s5
  %s8 = scalar_select 0, %s7, %s5
  $region1: #{tpu_custom_call.1} parent=0
    #allocation2 [shape = 'u8[8192]{0}', space=vmem, size = 0x2000, scoped, tag = 'input window, operand 0, single buffered']
    #allocation3 [shape = 's32[1]{0}', space=sflag, size = 0x4, scoped, tag = 'scoped memory for tpu_custom_call.1']
    #allocation4 [shape = 's32[1]{0}', space=sflag, size = 0x4, scoped, tag = 'scoped memory for tpu_custom_call.1']
    #allocation5 [shape = 'u8[65536]{0}', space=vmem, size = 0x10000, scoped, tag = 'input window, operand 1, single buffered']
    #allocation6 [shape = 's32[1]{0}', space=sflag, size = 0x4, scoped, tag = 'scoped memory for tpu_custom_call.1']
    #allocation7 [shape = 'u8[65536]{0}', space=vmem, size = 0x10000, scoped, tag = 'input window, operand 3, single buffered']
    #allocation8 [shape = 'u8[8192]{0}', space=vmem, size = 0x2000, scoped, tag = 'output window, operand 0, single buffered']
    %9 = vsyncpa [#allocation3], 0
    %10 = vsyncpa [#allocation6], 0
    %11 = vsyncpa [#allocation4], 0
    // Predicated region
    $region2: #{tpu_custom_call.1} parent=1 // pred_check
      _
    $region3: #{tpu_custom_call.1} parent=1 // pred_check_branch
      %13 = sbr.rel (0) target = $region5
    $region4: #{tpu_custom_call.1} parent=1 // pred_region
      %15 = vsyncadd [#allocation3], 0
      %s16 = sshll.u32 %s0, 4
      %s17 = int_to_ptr.hbm [resolvable:$true] %s16
      %s18 = sshll.u32 [#allocation2], 4
      %s19 = int_to_ptr.vmem [resolvable:$true] %s18
      %24 = dma.hbm_to_vmem [thread:$0]  %s17, 256, %s19, [#allocation3], 128, 128, 8
    $region5: #{tpu_custom_call.1} parent=1 // pred_fallthru
      _
    // Predicated region
    $region6: #{tpu_custom_call.1} parent=1 // pred_check
      _
    $region7: #{tpu_custom_call.1} parent=1 // pred_check_branch
      %26 = sbr.rel (0) target = $region9
    $region8: #{tpu_custom_call.1} parent=1 // pred_region
      %28 = vsyncadd [#allocation6], 0
      %s29 = sshll.u32 %s1, 4
      %s30 = int_to_ptr.hbm [resolvable:$true] %s29
      %s31 = sshll.u32 [#allocation5], 4
      %s32 = int_to_ptr.vmem [resolvable:$true] %s31
      %37 = dma.hbm_to_vmem [thread:$0]  %s30, 2048, %s32, [#allocation6], 128, 128, 8
    $region9: #{tpu_custom_call.1} parent=1 // pred_fallthru
      _
    // Predicated region
    $region10: #{tpu_custom_call.1} parent=1 // pred_check
      _
    $region11: #{tpu_custom_call.1} parent=1 // pred_check_branch
      %39 = sbr.rel (0) target = $region13
    $region12: #{tpu_custom_call.1} parent=1 // pred_region
      _
    $region13: #{tpu_custom_call.1} parent=1 // pred_fallthru
      _
    // Predicated region
    $region14: #{tpu_custom_call.1} parent=1 // pred_check
      _
    $region15: #{tpu_custom_call.1} parent=1 // pred_check_branch
      %41 = sbr.rel (0) target = $region17
    $region16: #{tpu_custom_call.1} parent=1 // pred_region
      %43 = vsyncadd [#allocation6], 0
      %s44 = sshll.u32 %s3, 4
      %s45 = int_to_ptr.hbm [resolvable:$true] %s44
      %s46 = sshll.u32 [#allocation7], 4
      %s47 = int_to_ptr.vmem [resolvable:$true] %s46
      %52 = dma.hbm_to_vmem [thread:$0]  %s45, 2048, %s47, [#allocation6], 128, 128, 8
    $region17: #{tpu_custom_call.1} parent=1 // pred_fallthru
      _
    // Predicated region
    $region18: #{tpu_custom_call.1} parent=1 // pred_check
      _
    $region19: #{tpu_custom_call.1} parent=1 // pred_check_branch
      %54 = sbr.rel (0) target = $region21
    $region20: #{tpu_custom_call.1} parent=1 // pred_region
      %56 = dma.done [#allocation3], 256
    $region21: #{tpu_custom_call.1} parent=1 // pred_fallthru
      _
    // Predicated region
    $region22: #{tpu_custom_call.1} parent=1 // pred_check
      _
    $region23: #{tpu_custom_call.1} parent=1 // pred_check_branch
      %58 = sbr.rel (0) target = $region25
    $region24: #{tpu_custom_call.1} parent=1 // pred_region
      %60 = dma.done [#allocation6], 2048
    $region25: #{tpu_custom_call.1} parent=1 // pred_fallthru
      _
    // Predicated region
    $region26: #{tpu_custom_call.1} parent=1 // pred_check
      _
    $region27: #{tpu_custom_call.1} parent=1 // pred_check_branch
      %62 = sbr.rel (0) target = $region29
    $region28: #{tpu_custom_call.1} parent=1 // pred_region
      %64 = dma.done [#allocation6], 2048
    $region29: #{tpu_custom_call.1} parent=1 // pred_fallthru
      _
    %v65 = vld [vmem:[#allocation2] sm:$0xff]
    %v66 = vld [vmem:[#allocation2 + $0x8] sm:$0xff]
    %67 = vadd.xlane.f32.xlu0 %v65
    %v68 = vpop.xlane.xlu0 %67
    %69 = vadd.xlane.f32.xlu0 %v66
    %v70 = vpop.xlane.xlu0 %69
    %v71 = vrcp.pop 128.0
    %v72 = vmul.f32 128.0, %v71
    %v73 = vsub.f32 1.0, %v72
    %v74 = vmul.f32 %v71, %v73
    %v75 = vadd.f32 %v71, %v74
    %vm76 = vweird.f32 %v71
    %v77 = vsel %vm76, %v71, %v75
    %v78 = vmul.f32 %v68, %v77
    %v79 = vmul.f32 %v70, %v77
    %v80 = vsub.f32 %v65, %v78
    %v81 = vsub.f32 %v66, %v79
    %v82 = vmul.f32 %v80, %v80
    %v83 = vmul.f32 %v81, %v81
    %84 = vadd.xlane.f32.xlu0 %v82
    %v85 = vpop.xlane.xlu0 %84
    %86 = vadd.xlane.f32.xlu0 %v83
    %v87 = vpop.xlane.xlu0 %86
    %v88 = vmul.f32 %v85, %v77
    %v89 = vmul.f32 %v87, %v77
    %v90 = vadd.f32 %v88, 1e-05
    %v91 = vadd.f32 %v89, 1e-05
    %v92 = vrsqrt.pop %v90
    %v93 = vmul.f32 %v92, %v90
    %v94 = vmul.f32 %v93, %v92
    %v95 = vmul.f32 0.5, %v94
    %v96 = vsub.f32 1.5, %v95
    %v97 = vmul.f32 %v92, %v96
    %vm98 = vweird.f32 %v90
    %vm99 = vweird.f32 %v92
    %vm100 = vmor %vm98, %vm99
    %v101 = vsel %vm100, %v92, %v97
    %v102 = vrsqrt.pop %v91
    %v103 = vmul.f32 %v102, %v91
    %v104 = vmul.f32 %v103, %v102
    %v105 = vmul.f32 0.5, %v104
    %v106 = vsub.f32 1.5, %v105
    %v107 = vmul.f32 %v102, %v106
    %vm108 = vweird.f32 %v91
    %vm109 = vweird.f32 %v102
    %vm110 = vmor %vm108, %vm109
    %v111 = vsel %vm110, %v102, %v107
    %v112 = vmul.f32 %v80, %v101
    %v113 = vmul.f32 %v81, %v111
    %v114 = vld [vmem:[#allocation5] sm:$0xff]
    %v115 = vld [vmem:[#allocation5 + $0x8] sm:$0xff]
    %v116 = vld [vmem:[#allocation5 + $0x10] sm:$0xff]
    %v117 = vld [vmem:[#allocation5 + $0x18] sm:$0xff]
    %v118 = vld [vmem:[#allocation5 + $0x20] sm:$0xff]
    %v119 = vld [vmem:[#allocation5 + $0x28] sm:$0xff]
    %v120 = vld [vmem:[#allocation5 + $0x30] sm:$0xff]
    %v121 = vld [vmem:[#allocation5 + $0x38] sm:$0xff]
    %v122 = vld [vmem:[#allocation5 + $0x40] sm:$0xff]
    %v123 = vld [vmem:[#allocation5 + $0x48] sm:$0xff]
    %v124 = vld [vmem:[#allocation5 + $0x50] sm:$0xff]
    %v125 = vld [vmem:[#allocation5 + $0x58] sm:$0xff]
    %v126 = vld [vmem:[#allocation5 + $0x60] sm:$0xff]
    %v127 = vld [vmem:[#allocation5 + $0x68] sm:$0xff]
    %v128 = vld [vmem:[#allocation5 + $0x70] sm:$0xff]
    %v129 = vld [vmem:[#allocation5 + $0x78] sm:$0xff]
    %v130 = vld [vmem:[%s2] sm:$0x1]
    %v132 = vperm.slane %v130, 0
    %134 = vmatpush.msra.mxu0 %v129
    %135 = vmatpush.msra.mxu0 %v128
    %136 = vmatpush.msra.mxu0 %v127
    %137 = vmatpush.msra.mxu0 %v126
    %138 = vmatpush.msra.mxu0 %v125
    %139 = vmatpush.msra.mxu0 %v124
    %140 = vmatpush.msra.mxu0 %v123
    %141 = vmatpush.msra.mxu0 %v122
    %142 = vmatpush.msra.mxu0 %v121
    %143 = vmatpush.msra.mxu0 %v120
    %144 = vmatpush.msra.mxu0 %v119
    %145 = vmatpush.msra.mxu0 %v118
    %146 = vmatpush.msra.mxu0 %v117
    %147 = vmatpush.msra.mxu0 %v116
    %148 = vmatpush.msra.mxu0 %v115
    %149 = vmatpush.msra.mxu0 %v114
    %150 = vmatmul.f32.gmra.mxu0 %v112
    %v151 = vpop.f32.mrf.mxu0
    %v152 = vadd.f32 %v132, %v151
    %153 = vmatmul.f32.gmra.mxu0 %v113
    %v154 = vpop.f32.mrf.mxu0
    %v155 = vadd.f32 %v132, %v154
    %156 = vdwg.mxu0
    %v157 = vmul.f32 %v152, 0.5
    %v158 = vmul.f32 %v155, 0.5
    %v159 = vmul.f32 %v152, 0.70710677
    %v160 = vmul.f32 %v155, 0.70710677
    %v161 = vand.u32 2147483647, %v159
    %v162 = vand.u32 2147483647, %v160
    %v163 = vmul.f32 %v161, 0.3275911
    %v164 = vmul.f32 %v162, 0.3275911
    %v165 = vadd.f32 %v163, 1.0
    %v166 = vadd.f32 %v164, 1.0
    %v167 = vrcp.pop %v165
    %v168 = vmul.f32 %v165, %v167
    %v169 = vsub.f32 1.0, %v168
    %v170 = vmul.f32 %v167, %v169
    %v171 = vadd.f32 %v167, %v170
    %vm172 = vweird.f32 %v165
    %vm173 = vweird.f32 %v167
    %vm174 = vmor %vm172, %vm173
    %v175 = vsel %vm174, %v167, %v171
    %v176 = vand.u32 2147483647, %v165
    %vm177 = vcmp.eq.f32.partialorder %v176, 8.507059e+37
    %v178 = vand.u32 %v165, 2147483648
    %v179 = vor.u32 1.1754944e-38, %v178
    %v180 = vsel %vm177, %v179, %v175
    %v181 = vrcp.pop %v166
    %v182 = vmul.f32 %v166, %v181
    %v183 = vsub.f32 1.0, %v182
    %v184 = vmul.f32 %v181, %v183
    %v185 = vadd.f32 %v181, %v184
    %vm186 = vweird.f32 %v166
    %vm187 = vweird.f32 %v181
    %vm188 = vmor %vm186, %vm187
    %v189 = vsel %vm188, %v181, %v185
    %v190 = vand.u32 2147483647, %v166
    %vm191 = vcmp.eq.f32.partialorder %v190, 8.507059e+37
    %v192 = vand.u32 %v166, 2147483648
    %v193 = vor.u32 1.1754944e-38, %v192
    %v194 = vsel %vm191, %v193, %v189
    %v195 = vmul.f32 %v180, 1.0614054
    %v196 = vmul.f32 %v194, 1.0614054
    %v197 = vadd.f32 %v195, -1.4531521
    %v198 = vadd.f32 %v196, -1.4531521
    %v199 = vmul.f32 %v180, %v197
    %v200 = vmul.f32 %v194, %v198
    %v201 = vadd.f32 %v199, 1.4214138
    %v202 = vadd.f32 %v200, 1.4214138
    %v203 = vmul.f32 %v180, %v201
    %v204 = vmul.f32 %v194, %v202
    %v205 = vadd.f32 %v203, -0.28449672
    %v206 = vadd.f32 %v204, -0.28449672
    %v207 = vmul.f32 %v180, %v205
    %v208 = vmul.f32 %v194, %v206
    %v209 = vadd.f32 %v207, 0.2548296
    %v210 = vadd.f32 %v208, 0.2548296
    %v211 = vmul.f32 %v180, %v209
    %v212 = vmul.f32 %v194, %v210
    %v213 = vsub.f32 0.0, %v161
    %v214 = vsub.f32 0.0, %v162
    %v215 = vmul.f32 %v213, %v161
    %v216 = vmul.f32 %v214, %v162
    %v217 = vmul.f32 %v215, 1.442695
    %v218 = vpow.pop %v217
    %v219 = vmul.f32 %v216, 1.442695
    %v220 = vpow.pop %v219
    %v221 = vmul.f32 %v211, %v218
    %v222 = vmul.f32 %v212, %v220
    %v223 = vsub.f32 1.0, %v221
    %v224 = vsub.f32 1.0, %v222
    %vm225 = vcmp.lt.f32.partialorder %v159, 0.0
    %vm226 = vcmp.lt.f32.partialorder %v160, 0.0
    %v227 = vsub.f32 0.0, %v223
    %v228 = vsub.f32 0.0, %v224
    %v229 = vsel %vm225, %v227, %v223
    %v230 = vsel %vm226, %v228, %v224
    %v231 = vadd.f32 %v229, 1.0
    %v232 = vadd.f32 %v230, 1.0
    %v233 = vmul.f32 %v157, %v231
    %v234 = vmul.f32 %v158, %v232
    %v235 = vld [vmem:[#allocation7] sm:$0xff]
    %v236 = vld [vmem:[#allocation7 + $0x8] sm:$0xff]
    %v237 = vld [vmem:[#allocation7 + $0x10] sm:$0xff]
    %v238 = vld [vmem:[#allocation7 + $0x18] sm:$0xff]
    %v239 = vld [vmem:[#allocation7 + $0x20] sm:$0xff]
    %v240 = vld [vmem:[#allocation7 + $0x28] sm:$0xff]
    %v241 = vld [vmem:[#allocation7 + $0x30] sm:$0xff]
    %v242 = vld [vmem:[#allocation7 + $0x38] sm:$0xff]
    %v243 = vld [vmem:[#allocation7 + $0x40] sm:$0xff]
    %v244 = vld [vmem:[#allocation7 + $0x48] sm:$0xff]
    %v245 = vld [vmem:[#allocation7 + $0x50] sm:$0xff]
    %v246 = vld [vmem:[#allocation7 + $0x58] sm:$0xff]
    %v247 = vld [vmem:[#allocation7 + $0x60] sm:$0xff]
    %v248 = vld [vmem:[#allocation7 + $0x68] sm:$0xff]
    %v249 = vld [vmem:[#allocation7 + $0x70] sm:$0xff]
    %v250 = vld [vmem:[#allocation7 + $0x78] sm:$0xff]
    %251 = vmatpush.msra.mxu0 %v250
    %252 = vmatpush.msra.mxu0 %v249
    %253 = vmatpush.msra.mxu0 %v248
    %254 = vmatpush.msra.mxu0 %v247
    %255 = vmatpush.msra.mxu0 %v246
    %256 = vmatpush.msra.mxu0 %v245
    %257 = vmatpush.msra.mxu0 %v244
    %258 = vmatpush.msra.mxu0 %v243
    %259 = vmatpush.msra.mxu0 %v242
    %260 = vmatpush.msra.mxu0 %v241
    %261 = vmatpush.msra.mxu0 %v240
    %262 = vmatpush.msra.mxu0 %v239
    %263 = vmatpush.msra.mxu0 %v238
    %264 = vmatpush.msra.mxu0 %v237
    %265 = vmatpush.msra.mxu0 %v236
    %266 = vmatpush.msra.mxu0 %v235
    %267 = vmatmul.f32.gmra.mxu0 %v233
    %v268 = vpop.f32.mrf.mxu0
    %v269 = vadd.f32 0.0, %v268
    %270 = vmatmul.f32.gmra.mxu0 %v234
    %v271 = vpop.f32.mrf.mxu0
    %v272 = vadd.f32 0.0, %v271
    %273 = vdwg.mxu0
    %v274 = vadd.f32 %v65, %v269
    %v275 = vadd.f32 %v66, %v272
    %276 = vst [vmem:[#allocation8] sm:$0xff] %v274
    %277 = vst [vmem:[#allocation8 + $0x8] sm:$0xff] %v275
    // Predicated region
    $region30: #{tpu_custom_call.1} parent=1 // pred_check
      _
    $region31: #{tpu_custom_call.1} parent=1 // pred_check_branch
      %279 = sbr.rel (0) target = $region33
    $region32: #{tpu_custom_call.1} parent=1 // pred_region
      %281 = vsyncadd [#allocation4], 0
      %s282 = sshll.u32 [#allocation8], 4
      %s283 = int_to_ptr.vmem [resolvable:$true] %s282
      %s284 = sshll.u32 %s4, 4
      %s285 = int_to_ptr.hbm [resolvable:$true] %s284
      %290 = dma.vmem_to_hbm [thread:$0]  %s283, 256, %s285, [#allocation4], 128, 128, 8
    $region33: #{tpu_custom_call.1} parent=1 // pred_fallthru
      _
    // Predicated region
    $region34: #{tpu_custom_call.1} parent=1 // pred_check
      _
    $region35: #{tpu_custom_call.1} parent=1 // pred_check_branch
      %292 = sbr.rel (0) target = $region37
    $region36: #{tpu_custom_call.1} parent=1 // pred_region
      %294 = dma.done [#allocation4], 256
    $region37: #{tpu_custom_call.1} parent=1 // pred_fallthru
      _
    %295 = vsyncpa [#allocation3], 1
    %296 = vsyncpa [#allocation6], 1
    %297 = vsyncpa [#allocation4], 1

</llo_original>
